<compile_context>
chip_gen: v7x
topology: tpu7x:2x2x1
jax: 0.10.0
libtpu: 0.0.40
codegen_flags: <defaults>
</compile_context>

<pallas_src>
import jax
import jax.numpy as jnp
from jax.experimental import pallas as pl
from jax.experimental.pallas import tpu as pltpu

_LANE = 128
_MIN_PALLAS_N = 128  # below this, pad + kernel dispatch costs more than XLA dot


def _round_up(v: int, m: int) -> int:
    return ((v + m - 1) // m) * m


def _largest_divisor(dim: int, candidates) -> int:
    for c in candidates:
        if c <= dim and dim % c == 0:
            return c
    return dim


def _vmem_capacity_bytes() -> int:
    """Per-generation VMEM capacity; safe fallback = 64 MiB (v7x per-TC)."""
    try:
        cap = int(getattr(pltpu.get_tpu_info(), "vmem_capacity_bytes", 0))
        if cap > 0:
            return cap
    except Exception:
        pass
    return 64 * 1024 * 1024


# ------------------------------ kernel bodies ------------------------------ #

def _resident_x_kernel(c_ref, x_ref, o_ref):
    """Single pass: full-K Coefficient strip x VMEM-resident x slab."""
    o_ref[...] = jnp.dot(
        c_ref[...], x_ref[...], preferred_element_type=jnp.float32
    ).astype(o_ref.dtype)


def _ktiled_kernel(c_ref, x_ref, o_ref, acc_ref):
    """K-tiled fallback: f32 accumulator, reduction grid axis last."""
    @pl.when(pl.program_id(2) == 0)
    def _():
        acc_ref[...] = jnp.zeros_like(acc_ref)

    acc_ref[...] += jnp.dot(
        c_ref[...], x_ref[...], preferred_element_type=jnp.float32
    )

    @pl.when(pl.program_id(2) == pl.num_programs(2) - 1)
    def _():
        o_ref[...] = acc_ref[...].astype(o_ref.dtype)


# ------------------------------ forward pass ------------------------------- #

def self_expression_forward(coefficient: jax.Array, x: jax.Array, *,
                            block_m: int | None = None,
                            block_n: int | None = None,
                            block_k: int | None = None) -> jax.Array:
    """y = coefficient @ x (f32 output) with a tiled Pallas TPU kernel.

    coefficient: (n, n), float32 or bfloat16 (storage dtype == compute dtype)
    x:           (n, d); it is cast to coefficient.dtype for the MXU operands,
                 accumulation is always f32.
    """
    n, k = coefficient.shape
    k2, d = x.shape
    if not (n == k == k2):
        raise ValueError("Coefficient must be (n, n) and x must be (n, d)")

    # Tiny problems: XLA's matmul is strictly faster than pad + kernel dispatch.
    if n < _MIN_PALLAS_N:
        return jnp.dot(coefficient.astype(jnp.float32), x.astype(jnp.float32),
                       preferred_element_type=jnp.float32)

    c_dtype = coefficient.dtype
    itemsize = jnp.dtype(c_dtype).itemsize

    # Minimal 128-alignment. The SelfExpression module passes a pre-padded
    # Coefficient, so the n^2 pad below only triggers for raw standalone calls.
    n_p = _round_up(n, _LANE)
    d_p = _round_up(d, _LANE)
    if n_p != n:
        coefficient = jnp.pad(coefficient, ((0, n_p - n), (0, n_p - n)))
    x_in = x.astype(c_dtype)
    if (n_p, d_p) != (n, d):
        x_in = jnp.pad(x_in, ((0, n_p - n), (0, d_p - d)))

    # Per-generation VMEM budget (v7x: 64 MiB; v5e/v6e: 128 MiB).
    vmem_capacity = _vmem_capacity_bytes()
    vmem_budget = int(vmem_capacity * 0.70)
    small_vmem = vmem_capacity <= 80 * 1024 * 1024   # v7x-like (2 TCs / chip)

    # Feature-dim tile: lane-dense output, full d_p when modest.
    if block_n is not None:
        tn = block_n
    elif d_p <= 1024:
        tn = d_p
    else:
        tn = _largest_divisor(d_p, (1024, 512, 256, 128))
    if d_p % tn:
        raise ValueError(f"block_n={tn} must divide padded feature dim {d_p}")
    grid_n = d_p // tn

    out_shape = jax.ShapeDtypeStruct((n_p, d_p), jnp.float32)
    flops = 2 * n_p * n_p * d_p
    c_bytes_total = n_p * n_p * itemsize
    x_bytes_total = n_p * d_p * itemsize
    o_bytes_total = n_p * d_p * 4

    # ---------- path 1: x-resident single pass (preferred) ----------------- #
    def _resident_footprint(tm_):
        return 2 * (tm_ * n_p * itemsize      # C strip (double-buffered)
                    + n_p * tn * itemsize     # resident x slab
                    + tm_ * tn * 4)           # f32 output tile

    tm_res = None
    if block_k is None:                       # explicit block_k forces K tiling
        cands = (block_m,) if block_m is not None else (512, 256, 128)
        for cand in cands:
            if cand and n_p % cand == 0 and _resident_footprint(cand) <= vmem_budget:
                tm_res = cand
                break

    if tm_res is not None:
        # Megacore balancing (v7x only): avoid odd/tiny total block counts.
        if block_m is None and small_vmem:
            gm = n_p // tm_res
            if ((gm * grid_n) % 2 == 1 and (gm * grid_n) < 8
                    and tm_res >= 256 and n_p % (tm_res // 2) == 0):
                tm_res //= 2
        grid_m = n_p // tm_res

        # Keep whichever operand would otherwise be re-streamed more resident.
        traffic_x_res = grid_n * c_bytes_total + x_bytes_total
        traffic_c_res = c_bytes_total + grid_m * x_bytes_total
        if traffic_x_res <= traffic_c_res:
            grid = (grid_n, grid_m)           # inner axis = M; x slab resident
            c_spec = pl.BlockSpec((tm_res, n_p), lambda j, i: (i, 0))
            x_spec = pl.BlockSpec((n_p, tn), lambda j, i: (0, j))
            o_spec = pl.BlockSpec((tm_res, tn), lambda j, i: (i, j))
            traffic = traffic_x_res
        else:
            grid = (grid_m, grid_n)           # inner axis = N; C strip resident
            c_spec = pl.BlockSpec((tm_res, n_p), lambda i, j: (i, 0))
            x_spec = pl.BlockSpec((n_p, tn), lambda i, j: (0, j))
            o_spec = pl.BlockSpec((tm_res, tn), lambda i, j: (i, j))
            traffic = traffic_c_res

        vmem_limit = int(min(vmem_capacity * 0.85,
                             max(32 * 1024 * 1024,
                                 _resident_footprint(tm_res) + (4 << 20))))
        y_p = pl.pallas_call(
            _resident_x_kernel,
            out_shape=out_shape,
            grid_spec=pltpu.PrefetchScalarGridSpec(
                num_scalar_prefetch=0,
                grid=grid,
                in_specs=[c_spec, x_spec],
                out_specs=o_spec),
            compiler_params=pltpu.CompilerParams(
                dimension_semantics=("parallel", "parallel"),
                vmem_limit_bytes=vmem_limit),
            cost_estimate=pl.CostEstimate(
                flops=flops, transcendentals=0,
                bytes_accessed=traffic + o_bytes_total),
        )(coefficient, x_in)

    # ---------- path 2: K-tiled fallback (x does not fit resident) --------- #
    else:
        tm = block_m if block_m is not None else _largest_divisor(n_p, (512, 256, 128))
        tk = block_k if block_k is not None else _largest_divisor(n_p, (1024, 512, 256, 128))

        def _kt_footprint(tm_, tk_, tn_):
            return (3 * tm_ * tk_ * itemsize     # C strips (3-deep buffering)
                    + 2 * tk_ * tn_ * itemsize   # x tiles
                    + 2 * tm_ * tn_ * 4          # output tiles
                    + tm_ * tn_ * 4)             # f32 accumulator

        while _kt_footprint(tm, tk, tn) > vmem_budget:
            if tk > 256 and n_p % (tk // 2) == 0:
                tk //= 2
            elif tm > 128 and n_p % (tm // 2) == 0:
                tm //= 2
            elif tn > 128 and d_p % (tn // 2) == 0:
                tn //= 2
            else:
                break
        if n_p % tm or n_p % tk or d_p % tn:
            raise ValueError("block sizes must divide the padded dims")
        grid = (n_p // tm, d_p // tn, n_p // tk)

        try:  # 3-deep pipelining on the dominant Coefficient stream
            c_spec = pl.BlockSpec((tm, tk), lambda i, j, kk: (i, kk),
                                  pipeline_mode=pl.Buffered(3))
        except (TypeError, AttributeError):
            c_spec = pl.BlockSpec((tm, tk), lambda i, j, kk: (i, kk))

        vmem_limit = int(min(vmem_capacity * 0.85,
                             max(32 * 1024 * 1024,
                                 _kt_footprint(tm, tk, tn) + (4 << 20))))
        y_p = pl.pallas_call(
            _ktiled_kernel,
            out_shape=out_shape,
            grid_spec=pltpu.PrefetchScalarGridSpec(
                num_scalar_prefetch=0,
                grid=grid,
                in_specs=[c_spec,
                          pl.BlockSpec((tk, tn), lambda i, j, kk: (kk, j))],
                out_specs=pl.BlockSpec((tm, tn), lambda i, j, kk: (i, j)),
                scratch_shapes=[pltpu.VMEM((tm, tn), jnp.float32)]),
            compiler_params=pltpu.CompilerParams(
                dimension_semantics=("parallel", "parallel", "arbitrary"),
                vmem_limit_bytes=vmem_limit),
            cost_estimate=pl.CostEstimate(
                flops=flops, transcendentals=0,
                bytes_accessed=(c_bytes_total
                                + (n_p // tm) * x_bytes_total
                                + o_bytes_total)),
        )(coefficient, x_in)

    if (n_p, d_p) != (n, d):
        y_p = y_p[:n, :d]
    return y_p


# --------------------------------- module ---------------------------------- #

class SelfExpression:
    """JAX mirror of the PyTorch SelfExpression module.

    `self.coefficient` is the logical f32 parameter, identical to PyTorch.
    A padded copy (optionally bfloat16) is stored once at init/update time so
    the hot forward path never pads or casts the n x n matrix. float32 is the
    default (PyTorch-faithful numerics); param_dtype=jnp.bfloat16 is an
    explicit opt-in that halves HBM traffic on this memory-bound kernel.
    """

    def __init__(self, n: int, param_dtype=jnp.float32):
        self.n = int(n)
        self.param_dtype = param_dtype
        self.coefficient = 1e-8 * jnp.ones((n, n), dtype=jnp.float32)
        self._refresh_padded_param()

    def _refresh_padded_param(self):
        n = self.n
        if n < _MIN_PALLAS_N:
            n_p = n                      # tiny case bypasses Pallas anyway
        else:
            n_p = _round_up(n, _LANE)
        c = self.coefficient.astype(self.param_dtype)
        if n_p != n:
            c = jnp.pad(c, ((0, n_p - n), (0, n_p - n)))
        self._coeff_padded = c
        self._n_padded = n_p

    def update_coefficient(self, new_coefficient: jax.Array):
        """Install new parameter values (e.g. after an optimizer step)."""
        assert new_coefficient.shape == (self.n, self.n)
        self.coefficient = jnp.asarray(new_coefficient, dtype=jnp.float32)
        self._refresh_padded_param()

    def __call__(self, x: jax.Array) -> jax.Array:
        n, d = x.shape
        assert n == self.n, "x must be (n, d) with the module's n"
        if n < _MIN_PALLAS_N:
            return jnp.dot(self.coefficient, x.astype(jnp.float32),
                           preferred_element_type=jnp.float32)
        n_p = self._n_padded
        d_p = _round_up(d, _LANE)
        x_in = x.astype(self.param_dtype)
        if (n_p, d_p) != (n, d):
            x_in = jnp.pad(x_in, ((0, n_p - n), (0, d_p - d)))
        y_p = self_expression_forward(self._coeff_padded, x_in)
        if (n_p, d_p) != (n, d):
            y_p = y_p[:n, :d]
        return y_p


if __name__ == "__main__":
    key = jax.random.PRNGKey(0)
    k0, k1, k2, k3 = jax.random.split(key, 4)

    # Case 1: tiny module-consistent shape -> XLA bypass, exact.
    n1, d1 = 8, 32
    x1 = jax.random.normal(k0, (n1, d1), dtype=jnp.float32)
    m1 = SelfExpression(n1)
    y1 = jax.block_until_ready(m1(x1))
    assert y1.shape == (n1, d1)
    assert jnp.allclose(y1, m1.coefficient @ x1, rtol=1e-6, atol=1e-9)

    # Case 2: ragged (non-128-multiple) shapes through the Pallas path (f32).
    n2, d2 = 200, 50
    c2 = (1e-8 * jnp.ones((n2, n2), jnp.float32)
          + 1e-3 * jax.random.normal(k1, (n2, n2), dtype=jnp.float32))
    x2 = jax.random.normal(k2, (n2, d2), dtype=jnp.float32)
    y2 = jax.block_until_ready(self_expression_forward(c2, x2))
    assert y2.shape == (n2, d2)
    assert jnp.allclose(y2, c2 @ x2, rtol=1e-4, atol=1e-6), "f32 Pallas mismatch"

    # Case 3: module path with persistent pre-padded f32 parameter.
    n3, d3 = 384, 96
    m3 = SelfExpression(n3)
    x3 = jax.random.normal(k3, (n3, d3), dtype=jnp.float32)
    y3 = jax.block_until_ready(m3(x3))
    assert y3.shape == (n3, d3)
    assert jnp.allclose(y3, m3.coefficient @ x3, rtol=1e-3, atol=1e-9), "module mismatch"

    # Case 4: bf16 persistent-parameter opt-in (halved HBM traffic), loose tol.
    n4, d4 = 512, 256
    m4 = SelfExpression(n4, param_dtype=jnp.bfloat16)
    c4 = (1e-8 * jnp.ones((n4, n4), jnp.float32)
          + 1e-3 * jax.random.normal(k1, (n4, n4), dtype=jnp.float32))
    m4.update_coefficient(c4)
    x4 = jax.random.normal(k2, (n4, d4), dtype=jnp.float32)
    y4 = jax.block_until_ready(m4(x4))
    assert y4.shape == (n4, d4)
    assert jnp.allclose(y4, c4 @ x4, rtol=5e-2, atol=2e-3), "bf16 opt-in mismatch"

    print("KERNEL_OK")
</pallas_src>

<mosaic_0001>
module attributes {stable_mosaic.version = 11 : i64} {
  func.func @_resident_x_kernel(%arg0: i32, %arg1: i32, %arg2: memref<128x256xf32, #tpu.memory_space<vmem>>, %arg3: memref<256x128xf32, #tpu.memory_space<vmem>>, %arg4: memref<128x128xf32, #tpu.memory_space<vmem>>) attributes {dimension_semantics = [#tpu.dimension_semantics<parallel>, #tpu.dimension_semantics<parallel>], iteration_bounds = array<i64: 1, 2>, scalar_prefetch = 0 : i64, scratch_operands = 0 : i64, tpu.core_type = #tpu.core_type<tc>, window_params = [{transform_indices = @transform_0, window_bounds = array<i64: 128, 256>}, {transform_indices = @transform_1, window_bounds = array<i64: 256, 128>}, {transform_indices = @transform_2, window_bounds = array<i64: 128, 128>}]} {
    %c0 = arith.constant 0 : index
    %c0_0 = arith.constant 0 : index
    %0 = vector.load %arg2[%c0, %c0_0] : memref<128x256xf32, #tpu.memory_space<vmem>>, vector<128x256xf32>
    %c0_1 = arith.constant 0 : index
    %c0_2 = arith.constant 0 : index
    %1 = vector.load %arg3[%c0_1, %c0_2] : memref<256x128xf32, #tpu.memory_space<vmem>>, vector<256x128xf32>
    %cst = arith.constant dense<0.000000e+00> : vector<128x128xf32>
    %2 = tpu.matmul %0, %1, %cst {dimension_numbers = #tpu.dot_dimension_numbers<[1], [0], [0], [1], [0, 0, 1, 1], [], []>} : vector<128x256xf32>, vector<256x128xf32>, vector<128x128xf32> -> vector<128x128xf32>
    %c0_3 = arith.constant 0 : index
    %c0_4 = arith.constant 0 : index
    %3 = vector.load %arg4[%c0_3, %c0_4] : memref<128x128xf32, #tpu.memory_space<vmem>>, vector<128x128xf32>
    tpu.vector_store %arg4[%c0_3, %c0_4], %2 {strides = array<i32>} : memref<128x128xf32, #tpu.memory_space<vmem>>, vector<128x128xf32>,
    return
  }
  func.func @transform_0(%arg0: i32, %arg1: i32) -> (i32, i32) {
    %c0_i32 = arith.constant 0 : i32
    %c0_i32_0 = arith.constant 0 : i32
    return %arg1, %c0_i32 : i32, i32
  }
  func.func @transform_1(%arg0: i32, %arg1: i32) -> (i32, i32) {
    %c0_i32 = arith.constant 0 : i32
    %c0_i32_0 = arith.constant 0 : i32
    return %c0_i32, %arg0 : i32, i32
  }
  func.func @transform_2(%arg0: i32, %arg1: i32) -> (i32, i32) {
    %c0_i32 = arith.constant 0 : i32
    return %arg1, %arg0 : i32, i32
  }
}

</mosaic_0001>

<llo_original>
// kernel: tpu_custom_call.1
$region0: #{tpu_custom_call.1}
  #allocation0 [shape = 'u32[]', space=smem, size = 0x4, offset = 0x4, fixed_abs, tag = 'smem constant byte address 0x4 - core index']
  #allocation1 [shape = 'u32[144,128]{1,0:T(1,128)}', space=vmem, size = 0x12000, scoped, tag = 'internal scratch']
  %s0 = inlined_call_operand.hbm [shape: f32[256,256], index: 0, kind: input, shape index: {}]
  %s1 = inlined_call_operand.hbm [shape: f32[256,128], index: 1, kind: input, shape index: {}]
  %s2 = inlined_call_operand.hbm [shape: f32[256,128], index: 2, kind: output, shape index: {}]
  %s3 = sld [smem:[#allocation0]]
  $region49: #{tpu_custom_call.1} parent=0
    _
  %s5 = ssub.s32 1, %s3
  %s6 = scalar_select 0, %s5, %s3
  $region1: #{tpu_custom_call.1} parent=0
    #allocation2 [shape = 'u8[262144]{0}', space=vmem, size = 0x40000, scoped, tag = 'input window, operand 0']
    #allocation3 [shape = 's32[2]{0}', space=sflag, size = 0x8, scoped, tag = 'scoped memory for tpu_custom_call.1']
    #allocation4 [shape = 's32[2]{0}', space=sflag, size = 0x8, scoped, tag = 'scoped memory for tpu_custom_call.1']
    #allocation5 [shape = 'u8[131072]{0}', space=vmem, size = 0x20000, scoped, tag = 'input window, operand 1, single buffered']
    #allocation6 [shape = 's32[1]{0}', space=sflag, size = 0x4, scoped, tag = 'scoped memory for tpu_custom_call.1']
    #allocation7 [shape = 'u8[131072]{0}', space=vmem, size = 0x20000, scoped, tag = 'output window, operand 0']
    %7 = vsyncpa [#allocation3], 0
    %s8 = scalar_lea.sflag [#allocation3], 1
    %9 = vsyncpa %s8, 0
    %10 = vsyncpa [#allocation6], 0
    %11 = vsyncpa [#allocation4], 0
    %s12 = scalar_lea.sflag [#allocation4], 1
    %13 = vsyncpa %s12, 0
    loop: start=0, step=1, limit=4
    $region2: #{tpu_custom_call.1} parent=1 // loop_pre_header
      _
    $region3: #{tpu_custom_call.1} parent=1 // loop_header
      %s15 = sphi 0, %s19
      %p16 = scmp.ge.s32.totalorder %s15, 4
      %s22 = sphi 0, %s34
      %s23 = sphi 0, %s30
      %s24 = sphi 0, %s22
      %s25 = sphi 0, %s23
      %s26 = sphi 0, %s24
      %s27 = sphi 0, %s25
      %s37 = sphi 0, %s39
      %s40 = sphi 0, %s37
      %s41 = sphi 0, %s40
      %s57 = sphi 0, %s41
      %s63 = sphi 0, %s65
      %s66 = sphi 0, %s63
      %s67 = sphi 0, %s66
      %s83 = sphi 0, %s67
      %s91 = sphi 0, %s93
      %s94 = sphi 0, %s91
      %s95 = sphi 0, %s94
      %s111 = sphi 0, %s95
    $region4: #{tpu_custom_call.1} parent=1 // loop_header_branch
      %18 = sbr.rel (%p16) target = $region8
    $region5: #{tpu_custom_call.1} parent=1 // loop_body
      %s20 = ssub.s32 %s15, 1
      %s21 = ssub.s32 %s15, 2
      %s28 = sadd.s32 1, %s23
      %p29 = scmp.ge.s32.totalorder %s28, 2
      %s30 = scalar_select %p29, 0, %s28
      %s31 = sadd.s32 1, %s22
      %s32 = scalar_select %p29, %s31, %s22
      %p33 = scmp.ge.s32.totalorder %s32, 1
      %s34 = scalar_select %p33, 0, %s32
      %s35 = ssub.s32 %s23, %s30
      %p36 = scmp.eq.s32.totalorder %s35, 0
      %s38 = sadd.s32 %s37, 1
      %s39 = scalar_select %p36, %s37, %s38
      %p42 = pneg %p36
      %p43 = scmp.eq.s32.totalorder %s15, 1
      %p44 = por %p42, %p43
      %p45 = scmp.ne.s32.totalorder %s37, %s40
      %p46 = scmp.eq.s32.totalorder %s15, 0
      %p47 = por %p45, %p46
      %p48 = scmp.ne.s32.totalorder %s37, %s40
      %p49 = scmp.eq.s32.totalorder %s20, 1
      %p50 = por %p48, %p49
      %p51 = scmp.ne.s32.totalorder %s40, %s41
      %p52 = scmp.eq.s32.totalorder %s20, 0
      %p53 = por %p51, %p52
      %p54 = scmp.ne.s32.totalorder %s40, %s41
      %p55 = scmp.eq.s32.totalorder %s21, 1
      %p56 = por %p54, %p55
      %p58 = scmp.ne.s32.totalorder %s41, %s57
      %p59 = scmp.eq.s32.totalorder %s21, 0
      %p60 = por %p58, %p59
      %s61 = ssub.s32 %s22, %s34
      %p62 = scmp.eq.s32.totalorder %s61, 0
      %s64 = sadd.s32 %s63, 1
      %s65 = scalar_select %p62, %s63, %s64
      %p68 = pneg %p62
      %p69 = scmp.eq.s32.totalorder %s15, 1
      %p70 = por %p68, %p69
      %p71 = scmp.ne.s32.totalorder %s63, %s66
      %p72 = scmp.eq.s32.totalorder %s15, 0
      %p73 = por %p71, %p72
      %p74 = scmp.ne.s32.totalorder %s63, %s66
      %p75 = scmp.eq.s32.totalorder %s20, 1
      %p76 = por %p74, %p75
      %p77 = scmp.ne.s32.totalorder %s66, %s67
      %p78 = scmp.eq.s32.totalorder %s20, 0
      %p79 = por %p77, %p78
      %p80 = scmp.ne.s32.totalorder %s66, %s67
      %p81 = scmp.eq.s32.totalorder %s21, 1
      %p82 = por %p80, %p81
      %p84 = scmp.ne.s32.totalorder %s67, %s83
      %p85 = scmp.eq.s32.totalorder %s21, 0
      %p86 = por %p84, %p85
      %s87 = ssub.s32 %s23, %s30
      %s88 = ssub.s32 %s22, %s34
      %s89 = sor.u32 %s87, %s88
      %p90 = scmp.eq.s32.totalorder %s89, 0
      %s92 = sadd.s32 %s91, 1
      %s93 = scalar_select %p90, %s91, %s92
      %p96 = pneg %p90
      %p97 = scmp.eq.s32.totalorder %s15, 1
      %p98 = por %p96, %p97
      %p99 = scmp.ne.s32.totalorder %s91, %s94
      %p100 = scmp.eq.s32.totalorder %s15, 0
      %p101 = por %p99, %p100
      %p102 = scmp.ne.s32.totalorder %s91, %s94
      %p103 = scmp.eq.s32.totalorder %s20, 1
      %p104 = por %p102, %p103
      %p105 = scmp.ne.s32.totalorder %s94, %s95
      %p106 = scmp.eq.s32.totalorder %s20, 0
      %p107 = por %p105, %p106
      %p108 = scmp.ne.s32.totalorder %s94, %s95
      %p109 = scmp.eq.s32.totalorder %s21, 1
      %p110 = por %p108, %p109
      %p112 = scmp.ne.s32.totalorder %s95, %s111
      %p113 = scmp.eq.s32.totalorder %s21, 0
      %p114 = por %p112, %p113
      %p115 = scmp.le.s32.totalorder 1, %s15
      %p116 = scmp.lt.s32.totalorder %s15, 3
      %p117 = pnand %p115, %p116
      %p118 = pneg %p117
      // Predicated region
      $region9: #{tpu_custom_call.1} parent=5 // pred_check
        _
      $region10: #{tpu_custom_call.1} parent=5 // pred_check_branch
        %120 = sbr.rel (%p117) target = $region12
      $region11: #{tpu_custom_call.1} parent=5 // pred_region
        %s121 = ssub.s32 %s15, 1
        // Predicated region
        $region13: #{tpu_custom_call.1} parent=11 // pred_check
          %p122 = pneg %p79
        $region14: #{tpu_custom_call.1} parent=11 // pred_check_branch
          %124 = sbr.rel (%p122) target = $region16
        $region15: #{tpu_custom_call.1} parent=11 // pred_region
          %s126 = ssub.s32 4096, 4096
          %127 = vsyncadd [#allocation6], %s126
          %s128 = smul.addr %s24, 128
          %s129 = scalar_lea.hbm %s1, %s128
          %s130 = sshll.u32 [#allocation5], 4
          %s131 = int_to_ptr.vmem [resolvable:$true] %s130
          %136 = dma.hbm_to_vmem [thread:$0]  %s129, 4096, %s131, [#allocation6], 128, 128, 8
        $region16: #{tpu_custom_call.1} parent=11 // pred_fallthru
          _
      $region12: #{tpu_custom_call.1} parent=5 // pred_fallthru
        _
      %p137 = scmp.lt.s32.totalorder %s15, 2
      // Predicated region
      $region17: #{tpu_custom_call.1} parent=5 // pred_check
        %p138 = pneg %p137
      $region18: #{tpu_custom_call.1} parent=5 // pred_check_branch
        %140 = sbr.rel (%p138) target = $region20
      $region19: #{tpu_custom_call.1} parent=5 // pred_region
        // Predicated region
        $region21: #{tpu_custom_call.1} parent=19 // pred_check
          %p141 = pneg %p47
        $region22: #{tpu_custom_call.1} parent=19 // pred_check_branch
          %143 = sbr.rel (%p141) target = $region24
        $region23: #{tpu_custom_call.1} parent=19 // pred_region
          %s144 = sand.u32 %s37, 1
          %s145 = scalar_lea.sflag [#allocation3], %s144
          %s146 = sand.u32 %s37, 1
          %s147 = smul.addr %s146, 256
          %s148 = scalar_lea.vmem [#allocation2], %s147
          %s149 = smul.u32 16, %s23
          %s151 = ssub.s32 4096, 4096
          %152 = vsyncadd %s145, %s151
          %s153 = smul.addr %s149, 2
          %s154 = smul.addr %s153, 128
          %s155 = scalar_lea.hbm %s0, %s154
          %s156 = sshll.u32 %s148, 4
          %s157 = int_to_ptr.vmem [resolvable:$true] %s156
          %162 = dma.hbm_to_vmem [thread:$0]  %s155, 4096, %s157, %s145, 256, 256, 16
        $region24: #{tpu_custom_call.1} parent=19 // pred_fallthru
          _
      $region20: #{tpu_custom_call.1} parent=5 // pred_fallthru
        _
      %p163 = scmp.le.s32.totalorder 1, %s15
      %p164 = scmp.lt.s32.totalorder %s15, 3
      %p165 = pnand %p163, %p164
      %p166 = pneg %p165
      // Predicated region
      $region25: #{tpu_custom_call.1} parent=5 // pred_check
        _
      $region26: #{tpu_custom_call.1} parent=5 // pred_check_branch
        %168 = sbr.rel (%p165) target = $region28
      $region27: #{tpu_custom_call.1} parent=5 // pred_region
        %s169 = ssub.s32 %s15, 1
        %s170 = sand.u32 %s40, 1
        %s171 = scalar_lea.sflag [#allocation3], %s170
        %s172 = sand.u32 %s40, 1
        %s173 = smul.addr %s172, 256
        %s174 = scalar_lea.vmem [#allocation2], %s173
        // Predicated region
        $region29: #{tpu_custom_call.1} parent=27 // pred_check
          %p175 = pneg %p53
        $region30: #{tpu_custom_call.1} parent=27 // pred_check_branch
          %177 = sbr.rel (%p175) target = $region32
        $region31: #{tpu_custom_call.1} parent=27 // pred_region
          %178 = dma.done %s171, 4096
        $region32: #{tpu_custom_call.1} parent=27 // pred_fallthru
          _
        // Predicated region
        $region33: #{tpu_custom_call.1} parent=27 // pred_check
          %p179 = pneg %p79
        $region34: #{tpu_custom_call.1} parent=27 // pred_check_branch
          %181 = sbr.rel (%p179) target = $region36
        $region35: #{tpu_custom_call.1} parent=27 // pred_region
          %182 = dma.done [#allocation6], 4096
        $region36: #{tpu_custom_call.1} parent=27 // pred_fallthru
          _
        %s183 = sand.u32 %s40, 1
        %s184 = scalar_lea.sflag [#allocation3], %s183
        %s185 = sand.u32 %s40, 1
        %s186 = smul.addr %s185, 256
        %s187 = scalar_lea.vmem [#allocation2], %s186
        %p188 = pneg %p53
        %p189 = pneg %p50
        %p190 = pneg %p79
        %p191 = pneg %p76
        %p192 = pneg %p107
        %p193 = pneg %p104
        %s194 = sand.u32 %s94, 1
        %s195 = scalar_lea.sflag [#allocation4], %s194
        %s196 = sand.u32 %s94, 1
        %s197 = smul.addr %s196, 128
        %s198 = scalar_lea.vmem [#allocation7], %s197
        %s199 = smul.u32 16, %s25
        %s200 = smul.u32 16, %s25
        %v201 = vld [vmem:[%s174] sm:$0xff]
        %v202 = vld [vmem:[%s174 + $0x8] sm:$0xff]
        %v203 = vld [vmem:[%s174 + $0x10] sm:$0xff]
        %v204 = vld [vmem:[%s174 + $0x18] sm:$0xff]
        %v205 = vld [vmem:[%s174 + $0x20] sm:$0xff]
        %v206 = vld [vmem:[%s174 + $0x28] sm:$0xff]
        %v207 = vld [vmem:[%s174 + $0x30] sm:$0xff]
        %v208 = vld [vmem:[%s174 + $0x38] sm:$0xff]
        %v209 = vld [vmem:[%s174 + $0x40] sm:$0xff]
        %v210 = vld [vmem:[%s174 + $0x48] sm:$0xff]
        %v211 = vld [vmem:[%s174 + $0x50] sm:$0xff]
        %v212 = vld [vmem:[%s174 + $0x58] sm:$0xff]
        %v213 = vld [vmem:[%s174 + $0x60] sm:$0xff]
        %v214 = vld [vmem:[%s174 + $0x68] sm:$0xff]
        %v215 = vld [vmem:[%s174 + $0x70] sm:$0xff]
        %v216 = vld [vmem:[%s174 + $0x78] sm:$0xff]
        %v217 = vld [vmem:[%s174 + $0x80] sm:$0xff]
        %v218 = vld [vmem:[%s174 + $0x88] sm:$0xff]
        %v219 = vld [vmem:[%s174 + $0x90] sm:$0xff]
        %v220 = vld [vmem:[%s174 + $0x98] sm:$0xff]
        %v221 = vld [vmem:[%s174 + $0xa0] sm:$0xff]
        %v222 = vld [vmem:[%s174 + $0xa8] sm:$0xff]
        %v223 = vld [vmem:[%s174 + $0xb0] sm:$0xff]
        %v224 = vld [vmem:[%s174 + $0xb8] sm:$0xff]
        %v225 = vld [vmem:[%s174 + $0xc0] sm:$0xff]
        %v226 = vld [vmem:[%s174 + $0xc8] sm:$0xff]
        %v227 = vld [vmem:[%s174 + $0xd0] sm:$0xff]
        %v228 = vld [vmem:[%s174 + $0xd8] sm:$0xff]
        %v229 = vld [vmem:[%s174 + $0xe0] sm:$0xff]
        %v230 = vld [vmem:[%s174 + $0xe8] sm:$0xff]
        %v231 = vld [vmem:[%s174 + $0xf0] sm:$0xff]
        %v232 = vld [vmem:[%s174 + $0xf8] sm:$0xff]
        %v233 = vld [vmem:[#allocation5] sm:$0xff]
        %v234 = vld [vmem:[#allocation5 + $0x8] sm:$0xff]
        %v235 = vld [vmem:[#allocation5 + $0x10] sm:$0xff]
        %v236 = vld [vmem:[#allocation5 + $0x18] sm:$0xff]
        %v237 = vld [vmem:[#allocation5 + $0x20] sm:$0xff]
        %v238 = vld [vmem:[#allocation5 + $0x28] sm:$0xff]
        %v239 = vld [vmem:[#allocation5 + $0x30] sm:$0xff]
        %v240 = vld [vmem:[#allocation5 + $0x38] sm:$0xff]
        %v241 = vld [vmem:[#allocation5 + $0x40] sm:$0xff]
        %v242 = vld [vmem:[#allocation5 + $0x48] sm:$0xff]
        %v243 = vld [vmem:[#allocation5 + $0x50] sm:$0xff]
        %v244 = vld [vmem:[#allocation5 + $0x58] sm:$0xff]
        %v245 = vld [vmem:[#allocation5 + $0x60] sm:$0xff]
        %v246 = vld [vmem:[#allocation5 + $0x68] sm:$0xff]
        %v247 = vld [vmem:[#allocation5 + $0x70] sm:$0xff]
        %v248 = vld [vmem:[#allocation5 + $0x78] sm:$0xff]
        %v249 = vld [vmem:[#allocation5 + $0x80] sm:$0xff]
        %v250 = vld [vmem:[#allocation5 + $0x88] sm:$0xff]
        %v251 = vld [vmem:[#allocation5 + $0x90] sm:$0xff]
        %v252 = vld [vmem:[#allocation5 + $0x98] sm:$0xff]
        %v253 = vld [vmem:[#allocation5 + $0xa0] sm:$0xff]
        %v254 = vld [vmem:[#allocation5 + $0xa8] sm:$0xff]
        %v255 = vld [vmem:[#allocation5 + $0xb0] sm:$0xff]
        %v256 = vld [vmem:[#allocation5 + $0xb8] sm:$0xff]
        %v257 = vld [vmem:[#allocation5 + $0xc0] sm:$0xff]
        %v258 = vld [vmem:[#allocation5 + $0xc8] sm:$0xff]
        %v259 = vld [vmem:[#allocation5 + $0xd0] sm:$0xff]
        %v260 = vld [vmem:[#allocation5 + $0xd8] sm:$0xff]
        %v261 = vld [vmem:[#allocation5 + $0xe0] sm:$0xff]
        %v262 = vld [vmem:[#allocation5 + $0xe8] sm:$0xff]
        %v263 = vld [vmem:[#allocation5 + $0xf0] sm:$0xff]
        %v264 = vld [vmem:[#allocation5 + $0xf8] sm:$0xff]
        %265 = vmatprep.subr.mxu0 0.0
        %266 = vmatpush1.msra.mxu0 %v233
        %267 = vmatprep.subr.mxu0 0.0
        %268 = vmatpush1.msra.mxu0 %v234
        %269 = vmatprep.subr.mxu0 0.0
        %270 = vmatpush1.msra.mxu0 %v235
        %271 = vmatprep.subr.mxu0 0.0
        %272 = vmatpush1.msra.mxu0 %v236
        %273 = vmatprep.subr.mxu0 0.0
        %274 = vmatpush1.msra.mxu0 %v237
        %275 = vmatprep.subr.mxu0 0.0
        %276 = vmatpush1.msra.mxu0 %v238
        %277 = vmatprep.subr.mxu0 0.0
        %278 = vmatpush1.msra.mxu0 %v239
        %279 = vmatprep.subr.mxu0 0.0
        %280 = vmatpush1.msra.mxu0 %v240
        %281 = vmatprep.subr.mxu0 0.0
        %282 = vmatpush1.msra.mxu0 %v241
        %283 = vmatprep.subr.mxu0 0.0
        %284 = vmatpush1.msra.mxu0 %v242
        %285 = vmatprep.subr.mxu0 0.0
        %286 = vmatpush1.msra.mxu0 %v243
        %287 = vmatprep.subr.mxu0 0.0
        %288 = vmatpush1.msra.mxu0 %v244
        %289 = vmatprep.subr.mxu0 0.0
        %290 = vmatpush1.msra.mxu0 %v245
        %291 = vmatprep.subr.mxu0 0.0
        %292 = vmatpush1.msra.mxu0 %v246
        %293 = vmatprep.subr.mxu0 0.0
        %294 = vmatpush1.msra.mxu0 %v247
        %295 = vmatprep.subr.mxu0 0.0
        %296 = vmatpush1.msra.mxu0 %v248
        %297 = vmatprep.subr.mxu0 0.0
        %298 = vmatpush1.msra.mxu0 %v249
        %299 = vmatprep.subr.mxu0 0.0
        %300 = vmatpush1.msra.mxu0 %v250
        %301 = vmatprep.subr.mxu0 0.0
        %302 = vmatpush1.msra.mxu0 %v251
        %303 = vmatprep.subr.mxu0 0.0
        %304 = vmatpush1.msra.mxu0 %v252
        %305 = vmatprep.subr.mxu0 0.0
        %306 = vmatpush1.msra.mxu0 %v253
        %307 = vmatprep.subr.mxu0 0.0
        %308 = vmatpush1.msra.mxu0 %v254
        %309 = vmatprep.subr.mxu0 0.0
        %310 = vmatpush1.msra.mxu0 %v255
        %311 = vmatprep.subr.mxu0 0.0
        %312 = vmatpush1.msra.mxu0 %v256
        %313 = vmatprep.subr.mxu0 0.0
        %314 = vmatpush1.msra.mxu0 %v257
        %315 = vmatprep.subr.mxu0 0.0
        %316 = vmatpush1.msra.mxu0 %v258
        %317 = vmatprep.subr.mxu0 0.0
        %318 = vmatpush1.msra.mxu0 %v259
        %319 = vmatprep.subr.mxu0 0.0
        %320 = vmatpush1.msra.mxu0 %v260
        %321 = vmatprep.subr.mxu0 0.0
        %322 = vmatpush1.msra.mxu0 %v261
        %323 = vmatprep.subr.mxu0 0.0
        %324 = vmatpush1.msra.mxu0 %v262
        %325 = vmatprep.subr.mxu0 0.0
        %326 = vmatpush1.msra.mxu0 %v263
        %327 = vmatprep.subr.mxu0 0.0
        %328 = vmatpush1.msra.mxu0 %v264
        %329 = vmatprep.mubr.f32.mxu0 %v202
        %330 = vmatmul.mubr.f32.gmra.mrb[0].mxu0 %v201
        %v331 = vpop.f32.mrb[0].mxu0
        %v332 = vadd.f32 0.0, %v331
        %v333 = vpop.f32.mrb[0].mxu0
        %334 = vmatprep.mubr.f32.mxu0 %v204
        %335 = vmatmul.mubr.f32.gmra.mrb[0].mxu0 %v203
        %v336 = vpop.f32.mrb[0].mxu0
        %v337 = vadd.f32 0.0, %v336
        %v338 = vpop.f32.mrb[0].mxu0
        %339 = vmatprep.mubr.f32.mxu0 %v206
        %340 = vmatmul.mubr.f32.gmra.mrb[0].mxu0 %v205
        %v341 = vpop.f32.mrb[0].mxu0
        %v342 = vadd.f32 0.0, %v341
        %v343 = vpop.f32.mrb[0].mxu0
        %344 = vmatprep.mubr.f32.mxu0 %v208
        %345 = vmatmul.mubr.f32.gmra.mrb[0].mxu0 %v207
        %v346 = vpop.f32.mrb[0].mxu0
        %v347 = vadd.f32 0.0, %v346
        %v348 = vpop.f32.mrb[0].mxu0
        %349 = vmatprep.mubr.f32.mxu0 %v210
        %350 = vmatmul.mubr.f32.gmra.mrb[0].mxu0 %v209
        %v351 = vpop.f32.mrb[0].mxu0
        %v352 = vadd.f32 0.0, %v351
        %v353 = vpop.f32.mrb[0].mxu0
        %354 = vmatprep.mubr.f32.mxu0 %v212
        %355 = vmatmul.mubr.f32.gmra.mrb[0].mxu0 %v211
        %v356 = vpop.f32.mrb[0].mxu0
        %v357 = vadd.f32 0.0, %v356
        %v358 = vpop.f32.mrb[0].mxu0
        %359 = vmatprep.mubr.f32.mxu0 %v214
        %360 = vmatmul.mubr.f32.gmra.mrb[0].mxu0 %v213
        %v361 = vpop.f32.mrb[0].mxu0
        %v362 = vadd.f32 0.0, %v361
        %v363 = vpop.f32.mrb[0].mxu0
        %364 = vmatprep.mubr.f32.mxu0 %v216
        %365 = vmatmul.mubr.f32.gmra.mrb[0].mxu0 %v215
        %v366 = vpop.f32.mrb[0].mxu0
        %v367 = vadd.f32 0.0, %v366
        %v368 = vpop.f32.mrb[0].mxu0
        %369 = vmatprep.mubr.f32.mxu0 %v218
        %370 = vmatmul.mubr.f32.gmra.mrb[0].mxu0 %v217
        %v371 = vpop.f32.mrb[0].mxu0
        %v372 = vadd.f32 0.0, %v371
        %v373 = vpop.f32.mrb[0].mxu0
        %374 = vmatprep.mubr.f32.mxu0 %v220
        %375 = vmatmul.mubr.f32.gmra.mrb[0].mxu0 %v219
        %v376 = vpop.f32.mrb[0].mxu0
        %v377 = vadd.f32 0.0, %v376
        %v378 = vpop.f32.mrb[0].mxu0
        %379 = vmatprep.mubr.f32.mxu0 %v222
        %380 = vmatmul.mubr.f32.gmra.mrb[0].mxu0 %v221
        %v381 = vpop.f32.mrb[0].mxu0
        %v382 = vadd.f32 0.0, %v381
        %v383 = vpop.f32.mrb[0].mxu0
        %384 = vmatprep.mubr.f32.mxu0 %v224
        %385 = vmatmul.mubr.f32.gmra.mrb[0].mxu0 %v223
        %v386 = vpop.f32.mrb[0].mxu0
        %v387 = vadd.f32 0.0, %v386
        %v388 = vpop.f32.mrb[0].mxu0
        %389 = vmatprep.mubr.f32.mxu0 %v226
        %390 = vmatmul.mubr.f32.gmra.mrb[0].mxu0 %v225
        %v391 = vpop.f32.mrb[0].mxu0
        %v392 = vadd.f32 0.0, %v391
        %v393 = vpop.f32.mrb[0].mxu0
        %394 = vmatprep.mubr.f32.mxu0 %v228
        %395 = vmatmul.mubr.f32.gmra.mrb[0].mxu0 %v227
        %v396 = vpop.f32.mrb[0].mxu0
        %v397 = vadd.f32 0.0, %v396
        %v398 = vpop.f32.mrb[0].mxu0
        %399 = vmatprep.mubr.f32.mxu0 %v230
        %400 = vmatmul.mubr.f32.gmra.mrb[0].mxu0 %v229
        %v401 = vpop.f32.mrb[0].mxu0
        %v402 = vadd.f32 0.0, %v401
        %v403 = vpop.f32.mrb[0].mxu0
        %404 = vmatprep.mubr.f32.mxu0 %v232
        %405 = vmatmul.mubr.f32.gmra.mrb[0].mxu0 %v231
        %v406 = vpop.f32.mrb[0].mxu0
        %v407 = vadd.f32 0.0, %v406
        %v408 = vpop.f32.mrb[0].mxu0
        %409 = vdwg.mxu0
        %410 = vst [vmem:[%s198] sm:$0xff] %v332
        %411 = vst [vmem:[%s198 + $0x8] sm:$0xff] %v337
        %412 = vst [vmem:[%s198 + $0x10] sm:$0xff] %v342
        %413 = vst [vmem:[%s198 + $0x18] sm:$0xff] %v347
        %414 = vst [vmem:[%s198 + $0x20] sm:$0xff] %v352
        %415 = vst [vmem:[%s198 + $0x28] sm:$0xff] %v357
        %416 = vst [vmem:[%s198 + $0x30] sm:$0xff] %v362
        %417 = vst [vmem:[%s198 + $0x38] sm:$0xff] %v367
        %418 = vst [vmem:[%s198 + $0x40] sm:$0xff] %v372
        %419 = vst [vmem:[%s198 + $0x48] sm:$0xff] %v377
        %420 = vst [vmem:[%s198 + $0x50] sm:$0xff] %v382
        %421 = vst [vmem:[%s198 + $0x58] sm:$0xff] %v387
        %422 = vst [vmem:[%s198 + $0x60] sm:$0xff] %v392
        %423 = vst [vmem:[%s198 + $0x68] sm:$0xff] %v397
        %424 = vst [vmem:[%s198 + $0x70] sm:$0xff] %v402
        %425 = vst [vmem:[%s198 + $0x78] sm:$0xff] %v407
        %s426 = sand.u32 %s94, 1
        %s427 = scalar_lea.sflag [#allocation4], %s426
        %s428 = sand.u32 %s94, 1
        %s429 = smul.addr %s428, 128
        %s430 = scalar_lea.vmem [#allocation7], %s429
        // Predicated region
        $region37: #{tpu_custom_call.1} parent=27 // pred_check
          %p431 = pneg %p104
        $region38: #{tpu_custom_call.1} parent=27 // pred_check_branch
          %433 = sbr.rel (%p431) target = $region40
        $region39: #{tpu_custom_call.1} parent=27 // pred_region
          %s434 = smul.u32 16, %s25
          %s436 = ssub.s32 2048, 2048
          %437 = vsyncadd %s427, %s436
          %s438 = sadd.s32 %s24, %s434
          %s439 = smul.addr %s438, 128
          %s440 = scalar_lea.hbm %s2, %s439
          %s441 = sshll.u32 %s430, 4
          %s442 = int_to_ptr.vmem [resolvable:$true] %s441
          %447 = dma.vmem_to_hbm [thread:$0]  %s442, 2048, %s440, %s427, 128, 128, 8
        $region40: #{tpu_custom_call.1} parent=27 // pred_fallthru
          _
      $region28: #{tpu_custom_call.1} parent=5 // pred_fallthru
        _
      %p448 = scmp.le.s32.totalorder 2, %s15
      // Predicated region
      $region41: #{tpu_custom_call.1} parent=5 // pred_check
        %p449 = pneg %p448
      $region42: #{tpu_custom_call.1} parent=5 // pred_check_branch
        %451 = sbr.rel (%p449) target = $region44
      $region43: #{tpu_custom_call.1} parent=5 // pred_region
        %s452 = ssub.s32 %s15, 2
        // Predicated region
        $region45: #{tpu_custom_call.1} parent=43 // pred_check
          %p453 = pneg %p110
        $region46: #{tpu_custom_call.1} parent=43 // pred_check_branch
          %455 = sbr.rel (%p453) target = $region48
        $region47: #{tpu_custom_call.1} parent=43 // pred_region
          %s456 = sand.u32 %s95, 1
          %s457 = scalar_lea.sflag [#allocation4], %s456
          %s458 = sand.u32 %s95, 1
          %s459 = smul.addr %s458, 128
          %s460 = scalar_lea.vmem [#allocation7], %s459
          %461 = dma.done %s457, 2048
        $region48: #{tpu_custom_call.1} parent=43 // pred_fallthru
          _
      $region44: #{tpu_custom_call.1} parent=5 // pred_fallthru
        _
    $region6: #{tpu_custom_call.1} parent=1 // loop_footer
      %s19 = sadd.s32 1, %s15
    $region7: #{tpu_custom_call.1} parent=1 // loop_footer_branch
      %14 = sbr.rel target = $region3
    $region8: #{tpu_custom_call.1} parent=1 // loop_exit
      _
    %462 = vsyncpa [#allocation3], 1
    %s463 = scalar_lea.sflag [#allocation3], 1
    %464 = vsyncpa %s463, 1
    %465 = vsyncpa [#allocation6], 1
    %466 = vsyncpa [#allocation4], 1
    %s467 = scalar_lea.sflag [#allocation4], 1
    %468 = vsyncpa %s467, 1

</llo_original>
